<compile_context>
chip_gen: v7x
topology: tpu7x:2x2x1
jax: 0.10.0
libtpu: 0.0.40
codegen_flags: <defaults>
</compile_context>

<pallas_src>
import functools

import jax
import jax.numpy as jnp
from jax.experimental import pallas as pl
from jax.experimental.pallas import tpu as pltpu

_LANE = 128
_MAX_BLOCK_BYTES = 3 * 1024 * 1024      # ~3 MiB/block -> ~12 MiB double-buffered I/O
_VMEM_LIMIT_BYTES = 32 * 1024 * 1024    # safe on v5e/v6e (128 MiB phys) and v7x (64 MiB phys)


def _sublane_multiple(itemsize):
    # dtype-native sublane packing: f32 -> 8, bf16 -> 16, int8/fp8 -> 32
    return {4: 8, 2: 16, 1: 32}.get(itemsize, 8)


def _largest_divisor_tile(s, cap, mult, min_tiles=1):
    """Largest t with t % mult == 0, t <= cap, s % t == 0, s // t >= min_tiles."""
    upper = min(cap, s // max(min_tiles, 1))
    t = (upper // mult) * mult
    while t >= mult:
        if s % t == 0:
            return t
        t -= mult
    return None


def _largest_batch_tile(n, per_item_bytes, num_s_tiles):
    """Pack several batch elements per block for tiny images; keep >=2 grid steps."""
    if n <= 1:
        return 1
    want = max(1, min(n, _MAX_BLOCK_BYTES // max(per_item_bytes, 1)))
    if num_s_tiles == 1:
        want = min(want, max(1, n // 2))   # leave >=2 steps for v7x's two TCs
    tn = 1
    for d in range(1, want + 1):
        if n % d == 0:
            tn = d
    return tn


def _adjust_saturation_kernel(x_ref, o_ref, *, factor):
    # x_ref block: (TN, 3, TILE_S, 128) or (TN, 3, H, W); channel on a leading axis.
    f = float(factor)
    cr = (1.0 - f) * 0.2989
    cg = (1.0 - f) * 0.587
    cb = (1.0 - f) * 0.114

    r = x_ref[:, 0, :, :].astype(jnp.float32)
    g = x_ref[:, 1, :, :].astype(jnp.float32)
    b = x_ref[:, 2, :, :].astype(jnp.float32)

    gray_s = cr * r + cg * g + cb * b          # == (1 - factor) * gray

    o_ref[:, 0, :, :] = jnp.clip(f * r + gray_s, 0.0, 1.0).astype(o_ref.dtype)
    o_ref[:, 1, :, :] = jnp.clip(f * g + gray_s, 0.0, 1.0).astype(o_ref.dtype)
    o_ref[:, 2, :, :] = jnp.clip(f * b + gray_s, 0.0, 1.0).astype(o_ref.dtype)


def adjust_saturation_pallas(img, factor):
    """img: (N, 3, H, W) float array in [0, 1]. Returns same shape/dtype."""
    n, c, h, w = img.shape
    assert c == 3, "adjust_saturation expects RGB (C=3) input"
    assert jnp.issubdtype(img.dtype, jnp.floating), "expects float input in [0, 1]"

    hw = h * w
    itemsize = jnp.dtype(img.dtype).itemsize
    mult = _sublane_multiple(itemsize)
    kernel = functools.partial(_adjust_saturation_kernel, factor=float(factor))

    # ---- Path B: lane-unaligned but small enough for one block per image -------
    # Block the original (H, W) plane directly; both trailing block dims equal the
    # full array dims (full-dim exception), so no pad and no output slice.
    if hw % _LANE != 0 and 3 * hw * itemsize <= _MAX_BLOCK_BYTES:
        tn = _largest_batch_tile(n, 3 * hw * itemsize, 1)
        block = (tn, c, h, w)
        return pl.pallas_call(
            kernel,
            out_shape=jax.ShapeDtypeStruct(img.shape, img.dtype),
            grid_spec=pltpu.PrefetchScalarGridSpec(
                num_scalar_prefetch=0,
                grid=(n // tn,),
                in_specs=[pl.BlockSpec(block, lambda i: (i, 0, 0, 0))],
                out_specs=pl.BlockSpec(block, lambda i: (i, 0, 0, 0)),
            ),
            compiler_params=pltpu.CompilerParams(
                dimension_semantics=("parallel",),
                vmem_limit_bytes=_VMEM_LIMIT_BYTES,
            ),
        )(img)

    # ---- Lane-dense paths: view the spatial axis as (S, 128) rows ---------------
    cap = max(mult, (_MAX_BLOCK_BYTES // (3 * _LANE * itemsize)) // mult * mult)

    if hw % _LANE == 0:
        # Fast path: free reshape, no pad, no slice.
        s = hw // _LANE
        if s <= cap:
            tile_s = s                                   # full-dim exception
            if n == 1 and s > mult:
                # Split into >=2 tiles so both v7x TensorCores get work.
                t = _largest_divisor_tile(s, cap, mult, min_tiles=2)
                if t is not None:
                    tile_s = t
        else:
            t = _largest_divisor_tile(s, cap, mult)
            tile_s = t if t is not None else cap
        s_pad = -(-s // tile_s) * tile_s
        pad = (s_pad - s) * _LANE                        # almost always 0
    else:
        # Large, lane-unaligned image: padding is unavoidable.
        s = pl.cdiv(hw, _LANE)
        tile_s = min(cap, -(-s // mult) * mult)
        s_pad = -(-s // tile_s) * tile_s
        pad = s_pad * _LANE - hw

    x = img.reshape(n, c, hw)
    if pad:
        x = jnp.pad(x, ((0, 0), (0, 0), (0, pad)))
    x = x.reshape(n, c, s_pad, _LANE)

    num_s_tiles = s_pad // tile_s
    tn = _largest_batch_tile(n, 3 * tile_s * _LANE * itemsize, num_s_tiles)
    block = (tn, c, tile_s, _LANE)

    out = pl.pallas_call(
        kernel,
        out_shape=jax.ShapeDtypeStruct((n, c, s_pad, _LANE), img.dtype),
        grid_spec=pltpu.PrefetchScalarGridSpec(
            num_scalar_prefetch=0,
            grid=(n // tn, num_s_tiles),
            in_specs=[pl.BlockSpec(block, lambda i, j: (i, 0, j, 0))],
            out_specs=pl.BlockSpec(block, lambda i, j: (i, 0, j, 0)),
        ),
        compiler_params=pltpu.CompilerParams(
            dimension_semantics=("parallel", "parallel"),
            vmem_limit_bytes=_VMEM_LIMIT_BYTES,
        ),
    )(x)

    out = out.reshape(n, c, s_pad * _LANE)
    if pad:
        out = out[:, :, :hw]
    return out.reshape(n, c, h, w)


class AdjustHue:
    """JAX/Pallas port of the PyTorch Adjust_hue noise layer.

    NOTE: matches the original module, which (despite its name) applies
    adjust_saturation to noised_and_cover[0].
    """

    def __init__(self, factor):
        self.factor = factor

    def __call__(self, noised_and_cover):
        encoded = noised_and_cover[0]
        encoded = adjust_saturation_pallas(encoded, self.factor)
        noised_and_cover = list(noised_and_cover)
        noised_and_cover[0] = encoded
        return noised_and_cover


def _reference(img, factor):
    gray = (0.2989 * img[:, 0:1] + 0.587 * img[:, 1:2] + 0.114 * img[:, 2:3])
    return jnp.clip(factor * img + (1.0 - factor) * gray, 0.0, 1.0)


if __name__ == "__main__":
    key = jax.random.PRNGKey(0)
    k1, k2, k3 = jax.random.split(key, 3)

    # small shapes: batch=2, RGB channels=3, spatial=16x16 (lane-aligned fast path)
    encoded = jax.random.uniform(k1, (2, 3, 16, 16), dtype=jnp.float32)
    cover = jax.random.uniform(k2, (2, 3, 16, 16), dtype=jnp.float32)

    layer = AdjustHue(factor=0.5)
    out_list = layer([encoded, cover])
    result = jax.block_until_ready(out_list[0])

    ref = _reference(encoded, 0.5)
    assert result.shape == encoded.shape
    assert jnp.allclose(result, ref, atol=1e-5), "mismatch vs reference (aligned path)"
    # cover element must pass through untouched
    assert jnp.array_equal(out_list[1], cover)

    # secondary check: lane-unaligned small image (exercises the no-pad (H, W) path)
    enc2 = jax.random.uniform(k3, (1, 3, 24, 40), dtype=jnp.float32)
    out2 = jax.block_until_ready(adjust_saturation_pallas(enc2, 0.3))
    assert jnp.allclose(out2, _reference(enc2, 0.3), atol=1e-5), \
        "mismatch vs reference (unaligned path)"

    print("KERNEL_OK")
</pallas_src>

<mosaic_0001>
module attributes {stable_mosaic.version = 11 : i64} {
  func.func @_adjust_saturation_kernel(%arg0: i32, %arg1: i32, %arg2: memref<1x3x2x128xf32, #tpu.memory_space<vmem>>, %arg3: memref<1x3x2x128xf32, #tpu.memory_space<vmem>>) attributes {dimension_semantics = [#tpu.dimension_semantics<parallel>, #tpu.dimension_semantics<parallel>], iteration_bounds = array<i64: 2, 1>, scalar_prefetch = 0 : i64, scratch_operands = 0 : i64, tpu.core_type = #tpu.core_type<tc>, window_params = [{transform_indices = @transform_0, window_bounds = array<i64: 1, 3, 2, 128>}, {transform_indices = @transform_1, window_bounds = array<i64: 1, 3, 2, 128>}]} {
    %c0 = arith.constant 0 : index
    %c0_0 = arith.constant 0 : index
    %c0_1 = arith.constant 0 : index
    %c0_2 = arith.constant 0 : index
    %0 = vector.load %arg2[%c0, %c0_0, %c0_1, %c0_2] : memref<1x3x2x128xf32, #tpu.memory_space<vmem>>, vector<1x1x2x128xf32>
    %1 = vector.shape_cast %0 : vector<1x1x2x128xf32> to vector<1x2x128xf32>
    %c0_3 = arith.constant 0 : index
    %c1 = arith.constant 1 : index
    %c0_4 = arith.constant 0 : index
    %c0_5 = arith.constant 0 : index
    %2 = vector.load %arg2[%c0_3, %c1, %c0_4, %c0_5] : memref<1x3x2x128xf32, #tpu.memory_space<vmem>>, vector<1x1x2x128xf32>
    %3 = vector.shape_cast %2 : vector<1x1x2x128xf32> to vector<1x2x128xf32>
    %c0_6 = arith.constant 0 : index
    %c2 = arith.constant 2 : index
    %c0_7 = arith.constant 0 : index
    %c0_8 = arith.constant 0 : index
    %4 = vector.load %arg2[%c0_6, %c2, %c0_7, %c0_8] : memref<1x3x2x128xf32, #tpu.memory_space<vmem>>, vector<1x1x2x128xf32>
    %5 = vector.shape_cast %4 : vector<1x1x2x128xf32> to vector<1x2x128xf32>
    %cst = arith.constant 1.494500e-01 : f32
    %6 = vector.broadcast %cst : f32 to vector<1x2x128xf32>
    %7 = arith.mulf %6, %1 : vector<1x2x128xf32>
    %cst_9 = arith.constant 2.935000e-01 : f32
    %8 = vector.broadcast %cst_9 : f32 to vector<1x2x128xf32>
    %9 = arith.mulf %8, %3 : vector<1x2x128xf32>
    %10 = arith.addf %7, %9 : vector<1x2x128xf32>
    %cst_10 = arith.constant 5.700000e-02 : f32
    %11 = vector.broadcast %cst_10 : f32 to vector<1x2x128xf32>
    %12 = arith.mulf %11, %5 : vector<1x2x128xf32>
    %13 = arith.addf %10, %12 : vector<1x2x128xf32>
    %cst_11 = arith.constant 5.000000e-01 : f32
    %14 = vector.broadcast %cst_11 : f32 to vector<1x2x128xf32>
    %15 = arith.mulf %14, %1 : vector<1x2x128xf32>
    %16 = arith.addf %15, %13 : vector<1x2x128xf32>
    %cst_12 = arith.constant 0.000000e+00 : f32
    %cst_13 = arith.constant 1.000000e+00 : f32
    %17 = vector.broadcast %cst_12 : f32 to vector<1x2x128xf32>
    %18 = arith.maximumf %17, %16 : vector<1x2x128xf32>
    %19 = vector.broadcast %cst_13 : f32 to vector<1x2x128xf32>
    %20 = arith.minimumf %19, %18 : vector<1x2x128xf32>
    %c0_14 = arith.constant 0 : index
    %c0_15 = arith.constant 0 : index
    %c0_16 = arith.constant 0 : index
    %c0_17 = arith.constant 0 : index
    %21 = vector.load %arg3[%c0_14, %c0_15, %c0_16, %c0_17] : memref<1x3x2x128xf32, #tpu.memory_space<vmem>>, vector<1x1x2x128xf32>
    %22 = vector.shape_cast %21 : vector<1x1x2x128xf32> to vector<1x2x128xf32>
    %23 = vector.shape_cast %20 : vector<1x2x128xf32> to vector<1x1x2x128xf32>
    tpu.vector_store %arg3[%c0_14, %c0_15, %c0_16, %c0_17], %23 {strides = array<i32>} : memref<1x3x2x128xf32, #tpu.memory_space<vmem>>, vector<1x1x2x128xf32>,
    %cst_18 = arith.constant 5.000000e-01 : f32
    %24 = vector.broadcast %cst_18 : f32 to vector<1x2x128xf32>
    %25 = arith.mulf %24, %3 : vector<1x2x128xf32>
    %26 = arith.addf %25, %13 : vector<1x2x128xf32>
    %cst_19 = arith.constant 0.000000e+00 : f32
    %cst_20 = arith.constant 1.000000e+00 : f32
    %27 = vector.broadcast %cst_19 : f32 to vector<1x2x128xf32>
    %28 = arith.maximumf %27, %26 : vector<1x2x128xf32>
    %29 = vector.broadcast %cst_20 : f32 to vector<1x2x128xf32>
    %30 = arith.minimumf %29, %28 : vector<1x2x128xf32>
    %c0_21 = arith.constant 0 : index
    %c1_22 = arith.constant 1 : index
    %c0_23 = arith.constant 0 : index
    %c0_24 = arith.constant 0 : index
    %31 = vector.load %arg3[%c0_21, %c1_22, %c0_23, %c0_24] : memref<1x3x2x128xf32, #tpu.memory_space<vmem>>, vector<1x1x2x128xf32>
    %32 = vector.shape_cast %31 : vector<1x1x2x128xf32> to vector<1x2x128xf32>
    %33 = vector.shape_cast %30 : vector<1x2x128xf32> to vector<1x1x2x128xf32>
    tpu.vector_store %arg3[%c0_21, %c1_22, %c0_23, %c0_24], %33 {strides = array<i32>} : memref<1x3x2x128xf32, #tpu.memory_space<vmem>>, vector<1x1x2x128xf32>,
    %cst_25 = arith.constant 5.000000e-01 : f32
    %34 = vector.broadcast %cst_25 : f32 to vector<1x2x128xf32>
    %35 = arith.mulf %34, %5 : vector<1x2x128xf32>
    %36 = arith.addf %35, %13 : vector<1x2x128xf32>
    %cst_26 = arith.constant 0.000000e+00 : f32
    %cst_27 = arith.constant 1.000000e+00 : f32
    %37 = vector.broadcast %cst_26 : f32 to vector<1x2x128xf32>
    %38 = arith.maximumf %37, %36 : vector<1x2x128xf32>
    %39 = vector.broadcast %cst_27 : f32 to vector<1x2x128xf32>
    %40 = arith.minimumf %39, %38 : vector<1x2x128xf32>
    %c0_28 = arith.constant 0 : index
    %c2_29 = arith.constant 2 : index
    %c0_30 = arith.constant 0 : index
    %c0_31 = arith.constant 0 : index
    %41 = vector.load %arg3[%c0_28, %c2_29, %c0_30, %c0_31] : memref<1x3x2x128xf32, #tpu.memory_space<vmem>>, vector<1x1x2x128xf32>
    %42 = vector.shape_cast %41 : vector<1x1x2x128xf32> to vector<1x2x128xf32>
    %43 = vector.shape_cast %40 : vector<1x2x128xf32> to vector<1x1x2x128xf32>
    tpu.vector_store %arg3[%c0_28, %c2_29, %c0_30, %c0_31], %43 {strides = array<i32>} : memref<1x3x2x128xf32, #tpu.memory_space<vmem>>, vector<1x1x2x128xf32>,
    return
  }
  func.func @transform_0(%arg0: i32, %arg1: i32) -> (i32, i32, i32, i32) {
    %c0_i32 = arith.constant 0 : i32
    %c0_i32_0 = arith.constant 0 : i32
    %c0_i32_1 = arith.constant 0 : i32
    return %arg0, %c0_i32, %arg1, %c0_i32_0 : i32, i32, i32, i32
  }
  func.func @transform_1(%arg0: i32, %arg1: i32) -> (i32, i32, i32, i32) {
    %c0_i32 = arith.constant 0 : i32
    %c0_i32_0 = arith.constant 0 : i32
    %c0_i32_1 = arith.constant 0 : i32
    return %arg0, %c0_i32, %arg1, %c0_i32_0 : i32, i32, i32, i32
  }
}

</mosaic_0001>

<llo_original>
// kernel: tpu_custom_call.1
$region0: #{tpu_custom_call.1}
  #allocation0 [shape = 'u32[]', space=smem, size = 0x4, offset = 0x4, fixed_abs, tag = 'smem constant byte address 0x4 - core index']
  #allocation1 [shape = 'u32[144,128]{1,0:T(1,128)}', space=vmem, size = 0x12000, scoped, tag = 'internal scratch']
  %s0 = inlined_call_operand.hbm [shape: f32[2,3,2,128], index: 0, kind: input, shape index: {}]
  %s1 = inlined_call_operand.hbm [shape: f32[2,3,2,128], index: 1, kind: output, shape index: {}]
  %s2 = sld [smem:[#allocation0]]
  $region41: #{tpu_custom_call.1} parent=0
    _
  %s4 = ssub.s32 1, %s2
  %s5 = scalar_select 0, %s4, %s2
  $region1: #{tpu_custom_call.1} parent=0
    #allocation2 [shape = 'u8[6144]{0}', space=vmem, size = 0x1800, scoped, tag = 'input window, operand 0']
    #allocation3 [shape = 's32[2]{0}', space=sflag, size = 0x8, scoped, tag = 'scoped memory for tpu_custom_call.1']
    #allocation4 [shape = 's32[2]{0}', space=sflag, size = 0x8, scoped, tag = 'scoped memory for tpu_custom_call.1']
    #allocation5 [shape = 'u8[6144]{0}', space=vmem, size = 0x1800, scoped, tag = 'output window, operand 0']
    %6 = vsyncpa [#allocation3], 0
    %s7 = scalar_lea.sflag [#allocation3], 1
    %8 = vsyncpa %s7, 0
    %9 = vsyncpa [#allocation4], 0
    %s10 = scalar_lea.sflag [#allocation4], 1
    %11 = vsyncpa %s10, 0
    loop: start=0, step=1, limit=4
    $region2: #{tpu_custom_call.1} parent=1 // loop_pre_header
      _
    $region3: #{tpu_custom_call.1} parent=1 // loop_header
      %s13 = sphi 0, %s17
      %p14 = scmp.ge.s32.totalorder %s13, 4
      %s20 = sphi 0, %s32
      %s21 = sphi 0, %s28
      %s22 = sphi 0, %s20
      %s23 = sphi 0, %s21
      %s24 = sphi 0, %s22
      %s25 = sphi 0, %s23
      %s37 = sphi 0, %s39
      %s40 = sphi 0, %s37
      %s41 = sphi 0, %s40
      %s57 = sphi 0, %s41
      %s65 = sphi 0, %s67
      %s68 = sphi 0, %s65
      %s69 = sphi 0, %s68
      %s85 = sphi 0, %s69
    $region4: #{tpu_custom_call.1} parent=1 // loop_header_branch
      %16 = sbr.rel (%p14) target = $region8
    $region5: #{tpu_custom_call.1} parent=1 // loop_body
      %s18 = ssub.s32 %s13, 1
      %s19 = ssub.s32 %s13, 2
      %s26 = sadd.s32 1, %s21
      %p27 = scmp.ge.s32.totalorder %s26, 1
      %s28 = scalar_select %p27, 0, %s26
      %s29 = sadd.s32 1, %s20
      %s30 = scalar_select %p27, %s29, %s20
      %p31 = scmp.ge.s32.totalorder %s30, 2
      %s32 = scalar_select %p31, 0, %s30
      %s33 = ssub.s32 %s20, %s32
      %s34 = ssub.s32 %s21, %s28
      %s35 = sor.u32 %s33, %s34
      %p36 = scmp.eq.s32.totalorder %s35, 0
      %s38 = sadd.s32 %s37, 1
      %s39 = scalar_select %p36, %s37, %s38
      %p42 = pneg %p36
      %p43 = scmp.eq.s32.totalorder %s13, 1
      %p44 = por %p42, %p43
      %p45 = scmp.ne.s32.totalorder %s37, %s40
      %p46 = scmp.eq.s32.totalorder %s13, 0
      %p47 = por %p45, %p46
      %p48 = scmp.ne.s32.totalorder %s37, %s40
      %p49 = scmp.eq.s32.totalorder %s18, 1
      %p50 = por %p48, %p49
      %p51 = scmp.ne.s32.totalorder %s40, %s41
      %p52 = scmp.eq.s32.totalorder %s18, 0
      %p53 = por %p51, %p52
      %p54 = scmp.ne.s32.totalorder %s40, %s41
      %p55 = scmp.eq.s32.totalorder %s19, 1
      %p56 = por %p54, %p55
      %p58 = scmp.ne.s32.totalorder %s41, %s57
      %p59 = scmp.eq.s32.totalorder %s19, 0
      %p60 = por %p58, %p59
      %s61 = ssub.s32 %s20, %s32
      %s62 = ssub.s32 %s21, %s28
      %s63 = sor.u32 %s61, %s62
      %p64 = scmp.eq.s32.totalorder %s63, 0
      %s66 = sadd.s32 %s65, 1
      %s67 = scalar_select %p64, %s65, %s66
      %p70 = pneg %p64
      %p71 = scmp.eq.s32.totalorder %s13, 1
      %p72 = por %p70, %p71
      %p73 = scmp.ne.s32.totalorder %s65, %s68
      %p74 = scmp.eq.s32.totalorder %s13, 0
      %p75 = por %p73, %p74
      %p76 = scmp.ne.s32.totalorder %s65, %s68
      %p77 = scmp.eq.s32.totalorder %s18, 1
      %p78 = por %p76, %p77
      %p79 = scmp.ne.s32.totalorder %s68, %s69
      %p80 = scmp.eq.s32.totalorder %s18, 0
      %p81 = por %p79, %p80
      %p82 = scmp.ne.s32.totalorder %s68, %s69
      %p83 = scmp.eq.s32.totalorder %s19, 1
      %p84 = por %p82, %p83
      %p86 = scmp.ne.s32.totalorder %s69, %s85
      %p87 = scmp.eq.s32.totalorder %s19, 0
      %p88 = por %p86, %p87
      %p89 = scmp.le.s32.totalorder 1, %s13
      %p90 = scmp.lt.s32.totalorder %s13, 3
      %p91 = pnand %p89, %p90
      %p92 = pneg %p91
      // Predicated region
      $region9: #{tpu_custom_call.1} parent=5 // pred_check
        _
      $region10: #{tpu_custom_call.1} parent=5 // pred_check_branch
        %94 = sbr.rel (%p91) target = $region12
      $region11: #{tpu_custom_call.1} parent=5 // pred_region
        %s95 = ssub.s32 %s13, 1
      $region12: #{tpu_custom_call.1} parent=5 // pred_fallthru
        _
      %p96 = scmp.lt.s32.totalorder %s13, 2
      // Predicated region
      $region13: #{tpu_custom_call.1} parent=5 // pred_check
        %p97 = pneg %p96
      $region14: #{tpu_custom_call.1} parent=5 // pred_check_branch
        %99 = sbr.rel (%p97) target = $region16
      $region15: #{tpu_custom_call.1} parent=5 // pred_region
        // Predicated region
        $region17: #{tpu_custom_call.1} parent=15 // pred_check
          %p100 = pneg %p47
        $region18: #{tpu_custom_call.1} parent=15 // pred_check_branch
          %102 = sbr.rel (%p100) target = $region20
        $region19: #{tpu_custom_call.1} parent=15 // pred_region
          %s103 = sand.u32 %s37, 1
          %s104 = scalar_lea.sflag [#allocation3], %s103
          %s105 = sand.u32 %s37, 1
          %s106 = smul.addr %s105, 6
          %s107 = scalar_lea.vmem [#allocation2], %s106
          %s109 = ssub.s32 96, 96
          %110 = vsyncadd %s104, %s109
          %s111 = smul.addr %s20, 3
          %s112 = sadd.s32 %s21, %s111
          %s113 = smul.addr %s112, 32
          %s114 = scalar_lea.hbm %s0, %s113
          %s115 = sshll.u32 %s107, 4
          %s116 = int_to_ptr.vmem [resolvable:$true] %s115
          %121 = dma.hbm_to_vmem [thread:$0]  %s114, 96, %s116, %s104, 32, 32, 2
        $region20: #{tpu_custom_call.1} parent=15 // pred_fallthru
          _
      $region16: #{tpu_custom_call.1} parent=5 // pred_fallthru
        _
      %p122 = scmp.le.s32.totalorder 1, %s13
      %p123 = scmp.lt.s32.totalorder %s13, 3
      %p124 = pnand %p122, %p123
      %p125 = pneg %p124
      // Predicated region
      $region21: #{tpu_custom_call.1} parent=5 // pred_check
        _
      $region22: #{tpu_custom_call.1} parent=5 // pred_check_branch
        %127 = sbr.rel (%p124) target = $region24
      $region23: #{tpu_custom_call.1} parent=5 // pred_region
        %s128 = ssub.s32 %s13, 1
        %s129 = sand.u32 %s40, 1
        %s130 = scalar_lea.sflag [#allocation3], %s129
        %s131 = sand.u32 %s40, 1
        %s132 = smul.addr %s131, 6
        %s133 = scalar_lea.vmem [#allocation2], %s132
        // Predicated region
        $region25: #{tpu_custom_call.1} parent=23 // pred_check
          %p134 = pneg %p53
        $region26: #{tpu_custom_call.1} parent=23 // pred_check_branch
          %136 = sbr.rel (%p134) target = $region28
        $region27: #{tpu_custom_call.1} parent=23 // pred_region
          %137 = dma.done %s130, 96
        $region28: #{tpu_custom_call.1} parent=23 // pred_fallthru
          _
        %s138 = sand.u32 %s40, 1
        %s139 = scalar_lea.sflag [#allocation3], %s138
        %s140 = sand.u32 %s40, 1
        %s141 = smul.addr %s140, 6
        %s142 = scalar_lea.vmem [#allocation2], %s141
        %p143 = pneg %p53
        %p144 = pneg %p50
        %p145 = pneg %p81
        %p146 = pneg %p78
        %s147 = sand.u32 %s68, 1
        %s148 = scalar_lea.sflag [#allocation4], %s147
        %s149 = sand.u32 %s68, 1
        %s150 = smul.addr %s149, 6
        %s151 = scalar_lea.vmem [#allocation5], %s150
        %v152 = vld [vmem:[%s133] sm:$0x3]
        %s153 = scalar_lea.vmem %s133, 2 [#allocation2]
        %v154 = vld [vmem:[%s153] sm:$0x3]
        %s155 = scalar_lea.vmem %s133, 4 [#allocation2]
        %v156 = vld [vmem:[%s155] sm:$0x3]
        %v157 = vmul.f32 %v152, 0.14945
        %v158 = vmul.f32 %v154, 0.2935
        %v159 = vadd.f32 %v157, %v158
        %v160 = vmul.f32 %v156, 0.057
        %v161 = vadd.f32 %v159, %v160
        %v162 = vmul.f32 %v152, 0.5
        %v163 = vadd.f32 %v162, %v161
        %v164 = vmax.f32 %v163, 0.0
        %v165 = vmin.f32 %v164, 1.0
        %166 = vst [vmem:[%s151] sm:$0x3] %v165
        %v167 = vmul.f32 %v154, 0.5
        %v168 = vadd.f32 %v167, %v161
        %v169 = vmax.f32 %v168, 0.0
        %v170 = vmin.f32 %v169, 1.0
        %s171 = scalar_lea.vmem %s151, 2 [#allocation5]
        %172 = vst [vmem:[%s171] sm:$0x3] %v170
        %v173 = vmul.f32 %v156, 0.5
        %v174 = vadd.f32 %v173, %v161
        %v175 = vmax.f32 %v174, 0.0
        %v176 = vmin.f32 %v175, 1.0
        %s177 = scalar_lea.vmem %s151, 4 [#allocation5]
        %178 = vst [vmem:[%s177] sm:$0x3] %v176
        %s179 = sand.u32 %s68, 1
        %s180 = scalar_lea.sflag [#allocation4], %s179
        %s181 = sand.u32 %s68, 1
        %s182 = smul.addr %s181, 6
        %s183 = scalar_lea.vmem [#allocation5], %s182
        // Predicated region
        $region29: #{tpu_custom_call.1} parent=23 // pred_check
          %p184 = pneg %p78
        $region30: #{tpu_custom_call.1} parent=23 // pred_check_branch
          %186 = sbr.rel (%p184) target = $region32
        $region31: #{tpu_custom_call.1} parent=23 // pred_region
          %s188 = ssub.s32 96, 96
          %189 = vsyncadd %s180, %s188
          %s190 = smul.addr %s22, 3
          %s191 = sadd.s32 %s23, %s190
          %s192 = smul.addr %s191, 32
          %s193 = scalar_lea.hbm %s1, %s192
          %s194 = sshll.u32 %s183, 4
          %s195 = int_to_ptr.vmem [resolvable:$true] %s194
          %200 = dma.vmem_to_hbm [thread:$0]  %s195, 96, %s193, %s180, 32, 32, 2
        $region32: #{tpu_custom_call.1} parent=23 // pred_fallthru
          _
      $region24: #{tpu_custom_call.1} parent=5 // pred_fallthru
        _
      %p201 = scmp.le.s32.totalorder 2, %s13
      // Predicated region
      $region33: #{tpu_custom_call.1} parent=5 // pred_check
        %p202 = pneg %p201
      $region34: #{tpu_custom_call.1} parent=5 // pred_check_branch
        %204 = sbr.rel (%p202) target = $region36
      $region35: #{tpu_custom_call.1} parent=5 // pred_region
        %s205 = ssub.s32 %s13, 2
        // Predicated region
        $region37: #{tpu_custom_call.1} parent=35 // pred_check
          %p206 = pneg %p84
        $region38: #{tpu_custom_call.1} parent=35 // pred_check_branch
          %208 = sbr.rel (%p206) target = $region40
        $region39: #{tpu_custom_call.1} parent=35 // pred_region
          %s209 = sand.u32 %s69, 1
          %s210 = scalar_lea.sflag [#allocation4], %s209
          %s211 = sand.u32 %s69, 1
          %s212 = smul.addr %s211, 6
          %s213 = scalar_lea.vmem [#allocation5], %s212
          %214 = dma.done %s210, 96
        $region40: #{tpu_custom_call.1} parent=35 // pred_fallthru
          _
      $region36: #{tpu_custom_call.1} parent=5 // pred_fallthru
        _
    $region6: #{tpu_custom_call.1} parent=1 // loop_footer
      %s17 = sadd.s32 1, %s13
    $region7: #{tpu_custom_call.1} parent=1 // loop_footer_branch
      %12 = sbr.rel target = $region3
    $region8: #{tpu_custom_call.1} parent=1 // loop_exit
      _
    %215 = vsyncpa [#allocation3], 1
    %s216 = scalar_lea.sflag [#allocation3], 1
    %217 = vsyncpa %s216, 1
    %218 = vsyncpa [#allocation4], 1
    %s219 = scalar_lea.sflag [#allocation4], 1
    %220 = vsyncpa %s219, 1

</llo_original>
